<compile_context>
chip_gen: v6e
topology: v6e:2x2x1
jax: 0.10.0
libtpu: 0.0.40
codegen_flags: <defaults>
</compile_context>

<pallas_src>
import math

import jax
import jax.numpy as jnp
from jax import lax
from jax.experimental import pallas as pl
from jax.experimental.pallas import tpu as pltpu

D_K = 64
_SCALE = 1.0 / math.sqrt(D_K)  # == 0.125, exactly representable
_LANE = 128


def _pad_lane(n):
    """Lane padding of a trailing dim to a multiple of 128."""
    return -(-n // _LANE) * _LANE


# ---------------------------------------------------------------------------
# Kernel bodies
# ---------------------------------------------------------------------------
def _softmax_pieces(q_ref, kT_ref, v_ref, m_ref):
    """Scores + row softmax pieces for one (HT, TQ) query tile.

    Returns (e, inv_denom, v_bf16) where attn == e * inv_denom.
    """
    # Fold 1/sqrt(d_k) into Q (exact power-of-two scale), cast matmul operands
    # to bf16 (native MXU dtype) and accumulate in f32.
    q = (q_ref[...] * _SCALE).astype(jnp.bfloat16)          # (HT, TQ, Dk)
    kT = kT_ref[...].astype(jnp.bfloat16)                    # (HT, Dk, Sk) lane-dense

    scores = lax.dot_general(
        q, kT,
        dimension_numbers=(((2,), (1,)), ((0,), (0,))),
        preferred_element_type=jnp.float32,
    )                                                        # (HT, TQ, Sk) f32

    # masked_fill(attn_mask, -1e9); mask block broadcasts over HT when shared.
    scores = jnp.where(m_ref[...] != 0, jnp.float32(-1e9), scores)

    mx = jnp.max(scores, axis=-1, keepdims=True)
    e = jnp.exp(scores - mx)
    inv = pl.reciprocal(jnp.sum(e, axis=-1, keepdims=True), approx=True)
    v = v_ref[...].astype(jnp.bfloat16)                      # (HT, Sk, Dv)
    return e, inv, v


def _sdpa_kernel(q_ref, kT_ref, v_ref, m_ref, ctx_ref, attn_ref):
    e, inv, v = _softmax_pieces(q_ref, kT_ref, v_ref, m_ref)
    attn = e * inv                                           # (HT, TQ, Sk)
    ctx = lax.dot_general(
        attn.astype(jnp.bfloat16), v,
        dimension_numbers=(((2,), (1,)), ((0,), (0,))),
        preferred_element_type=jnp.float32,
    )                                                        # (HT, TQ, Dv)
    ctx_ref[...] = ctx.astype(ctx_ref.dtype)
    attn_ref[...] = attn.astype(attn_ref.dtype)


def _sdpa_kernel_ctx_only(q_ref, kT_ref, v_ref, m_ref, ctx_ref):
    e, inv, v = _softmax_pieces(q_ref, kT_ref, v_ref, m_ref)
    # Skip normalizing attn: scale the (TQ, Dv) result instead of (TQ, Sk).
    ctx = lax.dot_general(
        e.astype(jnp.bfloat16), v,
        dimension_numbers=(((2,), (1,)), ((0,), (0,))),
        preferred_element_type=jnp.float32,
    )
    ctx_ref[...] = (ctx * inv).astype(ctx_ref.dtype)


# ---------------------------------------------------------------------------
# VMEM budget / tiling heuristic (generation aware)
# ---------------------------------------------------------------------------
def _vmem_capacity_bytes():
    try:
        cap = getattr(pltpu.get_tpu_info(), "vmem_capacity_bytes", None)
        if cap:
            return int(cap)
    except Exception:
        pass
    return 128 * 1024 * 1024  # v5e/v6e default


def _pick_tiles(BH, Sq, Sk, Dk, Dv, in_isz, attn_isz, mask_shared,
                return_attn, budget):
    """Pick (head-tile HT, query-tile TQ) fitting the VMEM budget."""
    TQ = Sq if Sq <= 256 else 256

    def vmem_bytes(ht, tq):
        mh = 1 if mask_shared else ht
        # Resident K^T / V (double-buffered by default), lane padding included.
        resident = 2 * ht * (Dk * _pad_lane(Sk) + Sk * _pad_lane(Dv)) * in_isz
        # Streamed per-step blocks (double-buffered).
        streamed = 2 * (ht * tq * _pad_lane(Dk) * in_isz          # Q
                        + mh * tq * _pad_lane(Sk) * 1             # mask (int8)
                        + ht * tq * _pad_lane(Dv) * in_isz)       # ctx out
        if return_attn:
            streamed += 2 * ht * tq * _pad_lane(Sk) * attn_isz    # attn out
        # Live (HT, TQ, Sk) temporaries: scores / e / attn in f32 + a bf16 copy.
        temps = ht * tq * _pad_lane(Sk) * (3 * 4 + 2)
        return resident + streamed + temps

    if Sq > 256:
        while TQ > 8 and vmem_bytes(1, TQ) > budget:
            TQ //= 2
    n_q = -(-Sq // TQ)

    # Keep the grid wide enough to feed v7x's two TensorCores on small shapes:
    # >=2 steps along a parallel axis and >=4 total steps when possible.
    max_ht = BH
    if BH >= 2:
        min_i = 1
        if n_q < 2:
            min_i = 2
        if n_q < 4 and n_q * BH >= 4:
            min_i = max(min_i, -(-4 // n_q))
        max_ht = max(1, BH // min(min_i, BH))

    HT = 1
    for cand in range(min(BH, 8, max_ht), 1, -1):
        if BH % cand == 0 and vmem_bytes(cand, TQ) <= budget:
            HT = cand
            break
    return HT, TQ


# ---------------------------------------------------------------------------
# Wrapper
# ---------------------------------------------------------------------------
def scaled_dot_product_attention(Q, K, V, attn_mask, *,
                                 return_attn=True, attn_dtype=None):
    """Q, K: [B,H,Sq/Sk,64]; V: [B,H,Sk,Dv]; attn_mask broadcastable to
    [B,H,Sq,Sk] (nonzero/True == masked).

    Returns (context, attn) like the PyTorch module, or just context when
    return_attn=False.  attn_dtype=jnp.bfloat16 halves the attn writeback.
    """
    B, H, Sq, Dk = Q.shape
    Sk = K.shape[2]
    Dv = V.shape[3]
    BH = B * H
    attn_dtype = Q.dtype if attn_dtype is None else jnp.dtype(attn_dtype)

    q = Q.reshape(BH, Sq, Dk)
    # Lane-dense resident K: one cheap XLA transpose in HBM -> (BH, Dk, Sk).
    kT = K.reshape(BH, Sk, Dk).transpose(0, 2, 1)
    v = V.reshape(BH, Sk, Dv)

    # Normalize the mask WITHOUT materializing a (B,H,Sq,Sk) broadcast in HBM.
    m_arr = jnp.asarray(attn_mask)
    if m_arr.ndim < 4:
        m_arr = m_arr.reshape((1,) * (4 - m_arr.ndim) + m_arr.shape)
    mB, mH = m_arr.shape[0], m_arr.shape[1]
    m_arr = jnp.broadcast_to(m_arr, (mB, mH, Sq, Sk))
    if mB == 1 and mH == 1:
        m_arr = m_arr.reshape(1, Sq, Sk)
        mask_shared = True
    elif mB == B and mH == H:
        m_arr = m_arr.reshape(BH, Sq, Sk)
        mask_shared = False
    else:
        # Partial broadcast (e.g. [B,1,Sq,Sk]); fall back to materializing.
        m_arr = jnp.broadcast_to(m_arr, (B, H, Sq, Sk)).reshape(BH, Sq, Sk)
        mask_shared = False
    m = m_arr if m_arr.dtype in (jnp.int8, jnp.uint8) else m_arr.astype(jnp.int8)

    # Generation-aware VMEM budget (128 MiB v5e/v6e, 64 MiB v7x).
    vmem_cap = _vmem_capacity_bytes()
    budget = int(vmem_cap * 0.40)
    vmem_limit = min(int(vmem_cap * 0.75), 112 * 1024 * 1024)

    in_isz = jnp.dtype(Q.dtype).itemsize
    attn_isz = jnp.dtype(attn_dtype).itemsize
    HT, TQ = _pick_tiles(BH, Sq, Sk, Dk, Dv, in_isz, attn_isz,
                         mask_shared, return_attn, budget)
    grid = (BH // HT, pl.cdiv(Sq, TQ))

    if mask_shared:
        m_spec = pl.BlockSpec((1, TQ, Sk), lambda i, j: (0, j, 0))
    else:
        m_spec = pl.BlockSpec((HT, TQ, Sk), lambda i, j: (i, j, 0))

    in_specs = [
        pl.BlockSpec((HT, TQ, Dk), lambda i, j: (i, j, 0)),   # Q    (streamed)
        pl.BlockSpec((HT, Dk, Sk), lambda i, j: (i, 0, 0)),   # K^T  (resident over j)
        pl.BlockSpec((HT, Sk, Dv), lambda i, j: (i, 0, 0)),   # V    (resident over j)
        m_spec,                                               # mask (int8)
    ]
    ctx_spec = pl.BlockSpec((HT, TQ, Dv), lambda i, j: (i, j, 0))
    attn_spec = pl.BlockSpec((HT, TQ, Sk), lambda i, j: (i, j, 0))

    compiler_params = pltpu.CompilerParams(
        dimension_semantics=("parallel", "parallel"),
        vmem_limit_bytes=vmem_limit,
    )

    if return_attn:
        ctx, attn = pl.pallas_call(
            _sdpa_kernel,
            out_shape=(
                jax.ShapeDtypeStruct((BH, Sq, Dv), Q.dtype),
                jax.ShapeDtypeStruct((BH, Sq, Sk), attn_dtype),
            ),
            grid_spec=pltpu.PrefetchScalarGridSpec(
                num_scalar_prefetch=0,
                grid=grid,
                in_specs=in_specs,
                out_specs=[ctx_spec, attn_spec],
            ),
            compiler_params=compiler_params,
        )(q, kT, v, m)
        return ctx.reshape(B, H, Sq, Dv), attn.reshape(B, H, Sq, Sk)

    ctx = pl.pallas_call(
        _sdpa_kernel_ctx_only,
        out_shape=jax.ShapeDtypeStruct((BH, Sq, Dv), Q.dtype),
        grid_spec=pltpu.PrefetchScalarGridSpec(
            num_scalar_prefetch=0,
            grid=grid,
            in_specs=in_specs,
            out_specs=ctx_spec,
        ),
        compiler_params=compiler_params,
    )(q, kT, v, m)
    return ctx.reshape(B, H, Sq, Dv)


# ---------------------------------------------------------------------------
# Reference + self-test
# ---------------------------------------------------------------------------
def _reference(Q, K, V, attn_mask):
    scores = jnp.matmul(Q, jnp.swapaxes(K, -1, -2),
                        precision=lax.Precision.HIGHEST) / math.sqrt(D_K)
    scores = jnp.where(attn_mask, -1e9, scores)
    attn = jax.nn.softmax(scores, axis=-1)
    ctx = jnp.matmul(attn, V, precision=lax.Precision.HIGHEST)
    return ctx, attn


def _causal(S):
    return jnp.triu(jnp.ones((S, S), dtype=jnp.bool_), k=1)[None, None]  # (1,1,S,S)


if __name__ == "__main__":
    key = jax.random.PRNGKey(0)

    # --- Test 1: small shapes, shared (1,1,S,S) causal mask ------------------
    B, H, S = 2, 2, 8
    kq, kk, kv, key = jax.random.split(key, 4)
    Q = jax.random.normal(kq, (B, H, S, D_K), dtype=jnp.float32)
    K = jax.random.normal(kk, (B, H, S, D_K), dtype=jnp.float32)
    V = jax.random.normal(kv, (B, H, S, D_K), dtype=jnp.float32)
    mask1 = _causal(S)

    ctx, attn = scaled_dot_product_attention(Q, K, V, mask1)
    jax.block_until_ready((ctx, attn))
    ctx_ref, attn_ref = _reference(Q, K, V, jnp.broadcast_to(mask1, (B, H, S, S)))
    assert jnp.allclose(ctx, ctx_ref, atol=5e-2, rtol=5e-2)
    assert jnp.allclose(attn, attn_ref, atol=2e-2, rtol=5e-2)

    # context-only path (skips the O(S^2) attn writeback)
    ctx_only = scaled_dot_product_attention(Q, K, V, mask1, return_attn=False)
    jax.block_until_ready(ctx_only)
    assert jnp.allclose(ctx_only, ctx_ref, atol=5e-2, rtol=5e-2)

    # per-(batch,head) mask path (no shared-mask shortcut)
    mask_full = jnp.broadcast_to(mask1, (B, H, S, S))
    ctx_f, attn_f = scaled_dot_product_attention(Q, K, V, mask_full)
    jax.block_until_ready((ctx_f, attn_f))
    assert jnp.allclose(ctx_f, ctx_ref, atol=5e-2, rtol=5e-2)
    assert jnp.allclose(attn_f, attn_ref, atol=2e-2, rtol=5e-2)

    # bf16 attn writeback path (halves the dominant HBM stream)
    _, attn_bf = scaled_dot_product_attention(Q, K, V, mask1,
                                              attn_dtype=jnp.bfloat16)
    jax.block_until_ready(attn_bf)
    assert jnp.allclose(attn_bf.astype(jnp.float32), attn_ref,
                        atol=3e-2, rtol=5e-2)

    # --- Test 2: multi q-tile path (resident K/V across Sq tiles) ------------
    B2, H2, S2 = 1, 2, 512
    kq, kk, kv, key = jax.random.split(key, 4)
    Q2 = jax.random.normal(kq, (B2, H2, S2, D_K), dtype=jnp.float32)
    K2 = jax.random.normal(kk, (B2, H2, S2, D_K), dtype=jnp.float32)
    V2 = jax.random.normal(kv, (B2, H2, S2, D_K), dtype=jnp.float32)
    mask2 = _causal(S2)

    ctx2, attn2 = scaled_dot_product_attention(Q2, K2, V2, mask2)
    jax.block_until_ready((ctx2, attn2))
    ctx2_ref, attn2_ref = _reference(Q2, K2, V2,
                                     jnp.broadcast_to(mask2, (B2, H2, S2, S2)))
    assert jnp.allclose(ctx2, ctx2_ref, atol=5e-2, rtol=5e-2)
    assert jnp.allclose(attn2, attn2_ref, atol=2e-2, rtol=5e-2)

    print("KERNEL_OK")
</pallas_src>

<mosaic_0001>
module attributes {stable_mosaic.version = 11 : i64} {
  func.func @_sdpa_kernel(%arg0: i32, %arg1: i32, %arg2: memref<1x8x64xf32, #tpu.memory_space<vmem>>, %arg3: memref<1x64x8xf32, #tpu.memory_space<vmem>>, %arg4: memref<1x8x64xf32, #tpu.memory_space<vmem>>, %arg5: memref<1x8x8xi8, #tpu.memory_space<vmem>>, %arg6: memref<1x8x64xf32, #tpu.memory_space<vmem>>, %arg7: memref<1x8x8xf32, #tpu.memory_space<vmem>>) attributes {dimension_semantics = [#tpu.dimension_semantics<parallel>, #tpu.dimension_semantics<parallel>], iteration_bounds = array<i64: 4, 1>, scalar_prefetch = 0 : i64, scratch_operands = 0 : i64, tpu.core_type = #tpu.core_type<tc>, window_params = [{transform_indices = @transform_0, window_bounds = array<i64: 1, 8, 64>}, {transform_indices = @transform_1, window_bounds = array<i64: 1, 64, 8>}, {transform_indices = @transform_2, window_bounds = array<i64: 1, 8, 64>}, {transform_indices = @transform_3, window_bounds = array<i64: 1, 8, 8>}, {transform_indices = @transform_4, window_bounds = array<i64: 1, 8, 64>}, {transform_indices = @transform_5, window_bounds = array<i64: 1, 8, 8>}]} {
    %c0 = arith.constant 0 : index
    %c0_0 = arith.constant 0 : index
    %c0_1 = arith.constant 0 : index
    %0 = vector.load %arg2[%c0, %c0_0, %c0_1] : memref<1x8x64xf32, #tpu.memory_space<vmem>>, vector<1x8x64xf32>
    %cst = arith.constant 1.250000e-01 : f32
    %1 = vector.broadcast %cst : f32 to vector<1x8x64xf32>
    %2 = arith.mulf %0, %1 : vector<1x8x64xf32>
    %3 = arith.truncf %2 : vector<1x8x64xf32> to vector<1x8x64xbf16>
    %c0_2 = arith.constant 0 : index
    %c0_3 = arith.constant 0 : index
    %c0_4 = arith.constant 0 : index
    %4 = vector.load %arg3[%c0_2, %c0_3, %c0_4] : memref<1x64x8xf32, #tpu.memory_space<vmem>>, vector<1x64x8xf32>
    %5 = arith.truncf %4 : vector<1x64x8xf32> to vector<1x64x8xbf16>
    %cst_5 = arith.constant dense<0.000000e+00> : vector<1x8x8xf32>
    %6 = tpu.matmul %3, %5, %cst_5 {dimension_numbers = #tpu.dot_dimension_numbers<[2], [1], [1], [2], [0, 0, 0, 1, 1, 2], [0], [0]>} : vector<1x8x64xbf16>, vector<1x64x8xbf16>, vector<1x8x8xf32> -> vector<1x8x8xf32>
    %c0_6 = arith.constant 0 : index
    %c0_7 = arith.constant 0 : index
    %c0_8 = arith.constant 0 : index
    %7 = vector.load %arg5[%c0_6, %c0_7, %c0_8] : memref<1x8x8xi8, #tpu.memory_space<vmem>>, vector<1x8x8xi8>
    %c0_i8 = arith.constant 0 : i8
    %8 = vector.broadcast %c0_i8 : i8 to vector<1x8x8xi8>
    %9 = arith.cmpi ne, %7, %8 : vector<1x8x8xi8>
    %cst_9 = arith.constant -1.000000e+09 : f32
    %10 = vector.broadcast %cst_9 : f32 to vector<1x8x8xf32>
    %11 = arith.select %9, %10, %6 : vector<1x8x8xi1>, vector<1x8x8xf32>
    %cst_10 = arith.constant dense<0xFF800000> : vector<1x8xf32>
    %12 = vector.multi_reduction <maximumf>, %11, %cst_10 [2] : vector<1x8x8xf32> to vector<1x8xf32>
    %13 = vector.shape_cast %12 : vector<1x8xf32> to vector<1x8x1xf32>
    %14 = vector.broadcast %13 : vector<1x8x1xf32> to vector<1x8x8xf32>
    %15 = arith.subf %11, %14 : vector<1x8x8xf32>
    %16 = math.exp %15 : vector<1x8x8xf32>
    %cst_11 = arith.constant dense<0.000000e+00> : vector<1x8xf32>
    %17 = vector.multi_reduction <add>, %16, %cst_11 [2] : vector<1x8x8xf32> to vector<1x8xf32>
    %18 = vector.shape_cast %17 : vector<1x8xf32> to vector<1x8x1xf32>
    %19 = tpu.reciprocal %18 {approx = true} : vector<1x8x1xf32> -> vector<1x8x1xf32>
    %c0_12 = arith.constant 0 : index
    %c0_13 = arith.constant 0 : index
    %c0_14 = arith.constant 0 : index
    %20 = vector.load %arg4[%c0_12, %c0_13, %c0_14] : memref<1x8x64xf32, #tpu.memory_space<vmem>>, vector<1x8x64xf32>
    %21 = arith.truncf %20 : vector<1x8x64xf32> to vector<1x8x64xbf16>
    %22 = vector.broadcast %19 : vector<1x8x1xf32> to vector<1x8x8xf32>
    %23 = arith.mulf %16, %22 : vector<1x8x8xf32>
    %24 = arith.truncf %23 : vector<1x8x8xf32> to vector<1x8x8xbf16>
    %cst_15 = arith.constant dense<0.000000e+00> : vector<1x8x64xf32>
    %25 = tpu.matmul %24, %21, %cst_15 {dimension_numbers = #tpu.dot_dimension_numbers<[2], [1], [1], [2], [0, 0, 0, 1, 1, 2], [0], [0]>} : vector<1x8x8xbf16>, vector<1x8x64xbf16>, vector<1x8x64xf32> -> vector<1x8x64xf32>
    %c0_16 = arith.constant 0 : index
    %c0_17 = arith.constant 0 : index
    %c0_18 = arith.constant 0 : index
    %26 = vector.load %arg6[%c0_16, %c0_17, %c0_18] : memref<1x8x64xf32, #tpu.memory_space<vmem>>, vector<1x8x64xf32>
    tpu.vector_store %arg6[%c0_16, %c0_17, %c0_18], %25 {strides = array<i32>} : memref<1x8x64xf32, #tpu.memory_space<vmem>>, vector<1x8x64xf32>,
    %c0_19 = arith.constant 0 : index
    %c0_20 = arith.constant 0 : index
    %c0_21 = arith.constant 0 : index
    %27 = vector.load %arg7[%c0_19, %c0_20, %c0_21] : memref<1x8x8xf32, #tpu.memory_space<vmem>>, vector<1x8x8xf32>
    tpu.vector_store %arg7[%c0_19, %c0_20, %c0_21], %23 {strides = array<i32>} : memref<1x8x8xf32, #tpu.memory_space<vmem>>, vector<1x8x8xf32>,
    return
  }
  func.func @transform_0(%arg0: i32, %arg1: i32) -> (i32, i32, i32) {
    %c0_i32 = arith.constant 0 : i32
    %c0_i32_0 = arith.constant 0 : i32
    return %arg0, %arg1, %c0_i32 : i32, i32, i32
  }
  func.func @transform_1(%arg0: i32, %arg1: i32) -> (i32, i32, i32) {
    %c0_i32 = arith.constant 0 : i32
    %c0_i32_0 = arith.constant 0 : i32
    %c0_i32_1 = arith.constant 0 : i32
    return %arg0, %c0_i32, %c0_i32_0 : i32, i32, i32
  }
  func.func @transform_2(%arg0: i32, %arg1: i32) -> (i32, i32, i32) {
    %c0_i32 = arith.constant 0 : i32
    %c0_i32_0 = arith.constant 0 : i32
    %c0_i32_1 = arith.constant 0 : i32
    return %arg0, %c0_i32, %c0_i32_0 : i32, i32, i32
  }
  func.func @transform_3(%arg0: i32, %arg1: i32) -> (i32, i32, i32) {
    %c0_i32 = arith.constant 0 : i32
    %c0_i32_0 = arith.constant 0 : i32
    %c0_i32_1 = arith.constant 0 : i32
    return %c0_i32, %arg1, %c0_i32_0 : i32, i32, i32
  }
  func.func @transform_4(%arg0: i32, %arg1: i32) -> (i32, i32, i32) {
    %c0_i32 = arith.constant 0 : i32
    %c0_i32_0 = arith.constant 0 : i32
    return %arg0, %arg1, %c0_i32 : i32, i32, i32
  }
  func.func @transform_5(%arg0: i32, %arg1: i32) -> (i32, i32, i32) {
    %c0_i32 = arith.constant 0 : i32
    %c0_i32_0 = arith.constant 0 : i32
    return %arg0, %arg1, %c0_i32 : i32, i32, i32
  }
}

</mosaic_0001>

<llo_original>
// kernel: tpu_custom_call.1
$region0: #{tpu_custom_call.1}
  #allocation0 [shape = 'u32[]', space=smem, size = 0x4, offset = 0x4, fixed_abs, tag = 'smem constant byte address 0x4 - core index']
  #allocation1 [shape = 'u32[144,128]{1,0:T(1,128)}', space=vmem, size = 0x12000, scoped, tag = 'internal scratch']
  %s0 = inlined_call_operand.vmem [shape: f32[4,8,64], index: 0, kind: input, shape index: {}]
  %s1 = inlined_call_operand.vmem [shape: f32[4,64,8], index: 1, kind: input, shape index: {}]
  %s2 = inlined_call_operand.vmem [shape: f32[4,8,64], index: 2, kind: input, shape index: {}]
  %s3 = inlined_call_operand.vmem [shape: s8[1,8,8], index: 3, kind: input, shape index: {}]
  %s4 = inlined_call_operand.hbm [shape: f32[4,8,64], index: 4, kind: output, shape index: {0}]
  %s5 = inlined_call_operand.hbm [shape: f32[4,8,8], index: 5, kind: output, shape index: {1}]
  %6 = xla_tuple %s4, %s5
  %s7 = sld [smem:[#allocation0]]
  $region57: #{tpu_custom_call.1} parent=0
    _
  %s9 = ssub.s32 1, %s7
  %s10 = scalar_select 0, %s9, %s7
  $region1: #{tpu_custom_call.1} parent=0
    #allocation2 [shape = 'u8[8192]{0}', space=vmem, size = 0x2000, scoped, tag = 'output window, operand 0']
    #allocation3 [shape = 's32[2]{0}', space=sflag, size = 0x8, scoped, tag = 'scoped memory for tpu_custom_call.1']
    #allocation4 [shape = 'u8[8192]{0}', space=vmem, size = 0x2000, scoped, tag = 'output window, operand 1']
    #allocation5 [shape = 's32[2]{0}', space=sflag, size = 0x8, scoped, tag = 'scoped memory for tpu_custom_call.1']
    %11 = vsyncpa [#allocation3], 0
    %s12 = scalar_lea.sflag [#allocation3], 1
    %13 = vsyncpa %s12, 0
    %14 = vsyncpa [#allocation5], 0
    %s15 = scalar_lea.sflag [#allocation5], 1
    %16 = vsyncpa %s15, 0
    loop: start=0, step=1, limit=6
    $region2: #{tpu_custom_call.1} parent=1 // loop_pre_header
      _
    $region3: #{tpu_custom_call.1} parent=1 // loop_header
      %s18 = sphi 0, %s22
      %p19 = scmp.ge.s32.totalorder %s18, 6
      %s25 = sphi 0, %s37
      %s26 = sphi 0, %s33
      %s27 = sphi 0, %s25
      %s28 = sphi 0, %s26
      %s29 = sphi 0, %s27
      %s30 = sphi 0, %s28
      %s42 = sphi 0, %s44
      %s45 = sphi 0, %s42
      %s46 = sphi 0, %s45
      %s62 = sphi 0, %s46
      %s68 = sphi 0, %s70
      %s71 = sphi 0, %s68
      %s72 = sphi 0, %s71
      %s88 = sphi 0, %s72
      %s94 = sphi 0, %s96
      %s97 = sphi 0, %s94
      %s98 = sphi 0, %s97
      %s114 = sphi 0, %s98
      %s120 = sphi 0, %s122
      %s123 = sphi 0, %s120
      %s124 = sphi 0, %s123
      %s140 = sphi 0, %s124
      %s148 = sphi 0, %s150
      %s151 = sphi 0, %s148
      %s152 = sphi 0, %s151
      %s168 = sphi 0, %s152
      %s176 = sphi 0, %s178
      %s179 = sphi 0, %s176
      %s180 = sphi 0, %s179
      %s196 = sphi 0, %s180
    $region4: #{tpu_custom_call.1} parent=1 // loop_header_branch
      %21 = sbr.rel (%p19) target = $region8
    $region5: #{tpu_custom_call.1} parent=1 // loop_body
      %s23 = ssub.s32 %s18, 1
      %s24 = ssub.s32 %s18, 2
      %s31 = sadd.s32 1, %s26
      %p32 = scmp.ge.s32.totalorder %s31, 1
      %s33 = scalar_select %p32, 0, %s31
      %s34 = sadd.s32 1, %s25
      %s35 = scalar_select %p32, %s34, %s25
      %p36 = scmp.ge.s32.totalorder %s35, 4
      %s37 = scalar_select %p36, 0, %s35
      %s38 = ssub.s32 %s25, %s37
      %s39 = ssub.s32 %s26, %s33
      %s40 = sor.u32 %s38, %s39
      %p41 = scmp.eq.s32.totalorder %s40, 0
      %s43 = sadd.s32 %s42, 1
      %s44 = scalar_select %p41, %s42, %s43
      %p47 = pneg %p41
      %p48 = scmp.eq.s32.totalorder %s18, 3
      %p49 = por %p47, %p48
      %p50 = scmp.ne.s32.totalorder %s42, %s45
      %p51 = scmp.eq.s32.totalorder %s18, 0
      %p52 = por %p50, %p51
      %p53 = scmp.ne.s32.totalorder %s42, %s45
      %p54 = scmp.eq.s32.totalorder %s23, 3
      %p55 = por %p53, %p54
      %p56 = scmp.ne.s32.totalorder %s45, %s46
      %p57 = scmp.eq.s32.totalorder %s23, 0
      %p58 = por %p56, %p57
      %p59 = scmp.ne.s32.totalorder %s45, %s46
      %p60 = scmp.eq.s32.totalorder %s24, 3
      %p61 = por %p59, %p60
      %p63 = scmp.ne.s32.totalorder %s46, %s62
      %p64 = scmp.eq.s32.totalorder %s24, 0
      %p65 = por %p63, %p64
      %s66 = ssub.s32 %s25, %s37
      %p67 = scmp.eq.s32.totalorder %s66, 0
      %s69 = sadd.s32 %s68, 1
      %s70 = scalar_select %p67, %s68, %s69
      %p73 = pneg %p67
      %p74 = scmp.eq.s32.totalorder %s18, 3
      %p75 = por %p73, %p74
      %p76 = scmp.ne.s32.totalorder %s68, %s71
      %p77 = scmp.eq.s32.totalorder %s18, 0
      %p78 = por %p76, %p77
      %p79 = scmp.ne.s32.totalorder %s68, %s71
      %p80 = scmp.eq.s32.totalorder %s23, 3
      %p81 = por %p79, %p80
      %p82 = scmp.ne.s32.totalorder %s71, %s72
      %p83 = scmp.eq.s32.totalorder %s23, 0
      %p84 = por %p82, %p83
      %p85 = scmp.ne.s32.totalorder %s71, %s72
      %p86 = scmp.eq.s32.totalorder %s24, 3
      %p87 = por %p85, %p86
      %p89 = scmp.ne.s32.totalorder %s72, %s88
      %p90 = scmp.eq.s32.totalorder %s24, 0
      %p91 = por %p89, %p90
      %s92 = ssub.s32 %s25, %s37
      %p93 = scmp.eq.s32.totalorder %s92, 0
      %s95 = sadd.s32 %s94, 1
      %s96 = scalar_select %p93, %s94, %s95
      %p99 = pneg %p93
      %p100 = scmp.eq.s32.totalorder %s18, 3
      %p101 = por %p99, %p100
      %p102 = scmp.ne.s32.totalorder %s94, %s97
      %p103 = scmp.eq.s32.totalorder %s18, 0
      %p104 = por %p102, %p103
      %p105 = scmp.ne.s32.totalorder %s94, %s97
      %p106 = scmp.eq.s32.totalorder %s23, 3
      %p107 = por %p105, %p106
      %p108 = scmp.ne.s32.totalorder %s97, %s98
      %p109 = scmp.eq.s32.totalorder %s23, 0
      %p110 = por %p108, %p109
      %p111 = scmp.ne.s32.totalorder %s97, %s98
      %p112 = scmp.eq.s32.totalorder %s24, 3
      %p113 = por %p111, %p112
      %p115 = scmp.ne.s32.totalorder %s98, %s114
      %p116 = scmp.eq.s32.totalorder %s24, 0
      %p117 = por %p115, %p116
      %s118 = ssub.s32 %s26, %s33
      %p119 = scmp.eq.s32.totalorder %s118, 0
      %s121 = sadd.s32 %s120, 1
      %s122 = scalar_select %p119, %s120, %s121
      %p125 = pneg %p119
      %p126 = scmp.eq.s32.totalorder %s18, 3
      %p127 = por %p125, %p126
      %p128 = scmp.ne.s32.totalorder %s120, %s123
      %p129 = scmp.eq.s32.totalorder %s18, 0
      %p130 = por %p128, %p129
      %p131 = scmp.ne.s32.totalorder %s120, %s123
      %p132 = scmp.eq.s32.totalorder %s23, 3
      %p133 = por %p131, %p132
      %p134 = scmp.ne.s32.totalorder %s123, %s124
      %p135 = scmp.eq.s32.totalorder %s23, 0
      %p136 = por %p134, %p135
      %p137 = scmp.ne.s32.totalorder %s123, %s124
      %p138 = scmp.eq.s32.totalorder %s24, 3
      %p139 = por %p137, %p138
      %p141 = scmp.ne.s32.totalorder %s124, %s140
      %p142 = scmp.eq.s32.totalorder %s24, 0
      %p143 = por %p141, %p142
      %s144 = ssub.s32 %s25, %s37
      %s145 = ssub.s32 %s26, %s33
      %s146 = sor.u32 %s144, %s145
      %p147 = scmp.eq.s32.totalorder %s146, 0
      %s149 = sadd.s32 %s148, 1
      %s150 = scalar_select %p147, %s148, %s149
      %p153 = pneg %p147
      %p154 = scmp.eq.s32.totalorder %s18, 3
      %p155 = por %p153, %p154
      %p156 = scmp.ne.s32.totalorder %s148, %s151
      %p157 = scmp.eq.s32.totalorder %s18, 0
      %p158 = por %p156, %p157
      %p159 = scmp.ne.s32.totalorder %s148, %s151
      %p160 = scmp.eq.s32.totalorder %s23, 3
      %p161 = por %p159, %p160
      %p162 = scmp.ne.s32.totalorder %s151, %s152
      %p163 = scmp.eq.s32.totalorder %s23, 0
      %p164 = por %p162, %p163
      %p165 = scmp.ne.s32.totalorder %s151, %s152
      %p166 = scmp.eq.s32.totalorder %s24, 3
      %p167 = por %p165, %p166
      %p169 = scmp.ne.s32.totalorder %s152, %s168
      %p170 = scmp.eq.s32.totalorder %s24, 0
      %p171 = por %p169, %p170
      %s172 = ssub.s32 %s25, %s37
      %s173 = ssub.s32 %s26, %s33
      %s174 = sor.u32 %s172, %s173
      %p175 = scmp.eq.s32.totalorder %s174, 0
      %s177 = sadd.s32 %s176, 1
      %s178 = scalar_select %p175, %s176, %s177
      %p181 = pneg %p175
      %p182 = scmp.eq.s32.totalorder %s18, 3
      %p183 = por %p181, %p182
      %p184 = scmp.ne.s32.totalorder %s176, %s179
      %p185 = scmp.eq.s32.totalorder %s18, 0
      %p186 = por %p184, %p185
      %p187 = scmp.ne.s32.totalorder %s176, %s179
      %p188 = scmp.eq.s32.totalorder %s23, 3
      %p189 = por %p187, %p188
      %p190 = scmp.ne.s32.totalorder %s179, %s180
      %p191 = scmp.eq.s32.totalorder %s23, 0
      %p192 = por %p190, %p191
      %p193 = scmp.ne.s32.totalorder %s179, %s180
      %p194 = scmp.eq.s32.totalorder %s24, 3
      %p195 = por %p193, %p194
      %p197 = scmp.ne.s32.totalorder %s180, %s196
      %p198 = scmp.eq.s32.totalorder %s24, 0
      %p199 = por %p197, %p198
      %p200 = scmp.le.s32.totalorder 1, %s18
      %p201 = scmp.lt.s32.totalorder %s18, 5
      %p202 = pnand %p200, %p201
      %p203 = pneg %p202
      // Predicated region
      $region9: #{tpu_custom_call.1} parent=5 // pred_check
        _
      $region10: #{tpu_custom_call.1} parent=5 // pred_check_branch
        %205 = sbr.rel (%p202) target = $region12
      $region11: #{tpu_custom_call.1} parent=5 // pred_region
        %s206 = ssub.s32 %s18, 1
        // Predicated region
        $region13: #{tpu_custom_call.1} parent=11 // pred_check
          %p207 = pneg %p136
        $region14: #{tpu_custom_call.1} parent=11 // pred_check_branch
          %209 = sbr.rel (%p207) target = $region16
        $region15: #{tpu_custom_call.1} parent=11 // pred_region
          %p210 = scmp.lt.s32.totalorder %s28, 0
          %s211 = scalar_select %p210, %s28, 0
          %s212 = smul.addr %s211, 2
          %s213 = scalar_lea.vmem %s3, %s212
        $region16: #{tpu_custom_call.1} parent=11 // pred_fallthru
          _
      $region12: #{tpu_custom_call.1} parent=5 // pred_fallthru
        _
      %p214 = scmp.lt.s32.totalorder %s18, 4
      // Predicated region
      $region17: #{tpu_custom_call.1} parent=5 // pred_check
        %p215 = pneg %p214
      $region18: #{tpu_custom_call.1} parent=5 // pred_check_branch
        %217 = sbr.rel (%p215) target = $region20
      $region19: #{tpu_custom_call.1} parent=5 // pred_region
        // Predicated region
        $region21: #{tpu_custom_call.1} parent=19 // pred_check
          %p218 = pneg %p52
        $region22: #{tpu_custom_call.1} parent=19 // pred_check_branch
          %220 = sbr.rel (%p218) target = $region24
        $region23: #{tpu_custom_call.1} parent=19 // pred_region
          %p221 = scmp.lt.s32.totalorder %s25, 3
          %s222 = scalar_select %p221, %s25, 3
          %p223 = scmp.lt.s32.totalorder %s26, 0
          %s224 = scalar_select %p223, %s26, 0
          %s225 = sadd.s32 %s224, %s222
          %s226 = smul.addr %s225, 8
          %s227 = scalar_lea.vmem %s0, %s226
        $region24: #{tpu_custom_call.1} parent=19 // pred_fallthru
          _
        // Predicated region
        $region25: #{tpu_custom_call.1} parent=19 // pred_check
          %p228 = pneg %p78
        $region26: #{tpu_custom_call.1} parent=19 // pred_check_branch
          %230 = sbr.rel (%p228) target = $region28
        $region27: #{tpu_custom_call.1} parent=19 // pred_region
          %p231 = scmp.lt.s32.totalorder %s25, 3
          %s232 = scalar_select %p231, %s25, 3
          %s233 = smul.addr %s232, 8
          %s234 = smul.addr %s233, 8
          %s235 = scalar_lea.vmem %s1, %s234
        $region28: #{tpu_custom_call.1} parent=19 // pred_fallthru
          _
        // Predicated region
        $region29: #{tpu_custom_call.1} parent=19 // pred_check
          %p236 = pneg %p104
        $region30: #{tpu_custom_call.1} parent=19 // pred_check_branch
          %238 = sbr.rel (%p236) target = $region32
        $region31: #{tpu_custom_call.1} parent=19 // pred_region
          %p239 = scmp.lt.s32.totalorder %s25, 3
          %s240 = scalar_select %p239, %s25, 3
          %s241 = smul.addr %s240, 8
          %s242 = scalar_lea.vmem %s2, %s241
        $region32: #{tpu_custom_call.1} parent=19 // pred_fallthru
          _
      $region20: #{tpu_custom_call.1} parent=5 // pred_fallthru
        _
      %p243 = scmp.le.s32.totalorder 1, %s18
      %p244 = scmp.lt.s32.totalorder %s18, 5
      %p245 = pnand %p243, %p244
      %p246 = pneg %p245
      // Predicated region
      $region33: #{tpu_custom_call.1} parent=5 // pred_check
        _
      $region34: #{tpu_custom_call.1} parent=5 // pred_check_branch
        %248 = sbr.rel (%p245) target = $region36
      $region35: #{tpu_custom_call.1} parent=5 // pred_region
        %s249 = ssub.s32 %s18, 1
        %p250 = scmp.lt.s32.totalorder %s27, 3
        %s251 = scalar_select %p250, %s27, 3
        %p252 = scmp.lt.s32.totalorder %s28, 0
        %s253 = scalar_select %p252, %s28, 0
        %s254 = sadd.s32 %s253, %s251
        %s255 = smul.addr %s254, 8
        %s256 = scalar_lea.vmem %s0, %s255
        %p257 = pneg %p58
        %p258 = pneg %p55
        %p259 = scmp.lt.s32.totalorder %s27, 3
        %s260 = scalar_select %p259, %s27, 3
        %s261 = smul.addr %s260, 8
        %s262 = smul.addr %s261, 8
        %s263 = scalar_lea.vmem %s1, %s262
        %p264 = pneg %p84
        %p265 = pneg %p81
        %p266 = scmp.lt.s32.totalorder %s27, 3
        %s267 = scalar_select %p266, %s27, 3
        %s268 = smul.addr %s267, 8
        %s269 = scalar_lea.vmem %s2, %s268
        %p270 = pneg %p110
        %p271 = pneg %p107
        %p272 = scmp.lt.s32.totalorder %s28, 0
        %s273 = scalar_select %p272, %s28, 0
        %s274 = smul.addr %s273, 2
        %s275 = scalar_lea.vmem %s3, %s274
        %p276 = pneg %p136
        %p277 = pneg %p133
        %p278 = pneg %p164
        %p279 = pneg %p161
        %s280 = sand.u32 %s151, 1
        %s281 = scalar_lea.sflag [#allocation3], %s280
        %s282 = sand.u32 %s151, 1
        %s283 = smul.addr %s282, 8
        %s284 = scalar_lea.vmem [#allocation2], %s283
        %p285 = pneg %p192
        %p286 = pneg %p189
        %s287 = sand.u32 %s179, 1
        %s288 = scalar_lea.sflag [#allocation5], %s287
        %s289 = sand.u32 %s179, 1
        %s290 = smul.addr %s289, 8
        %s291 = scalar_lea.vmem [#allocation4], %s290
        %p292 = scmp.lt.s32.totalorder %s27, 3
        %s293 = scalar_select %p292, %s27, 3
        %p294 = scmp.lt.s32.totalorder %s28, 0
        %s295 = scalar_select %p294, %s28, 0
        %s296 = sadd.s32 %s295, %s293
        %s297 = smul.addr %s296, 8
        %s298 = scalar_lea.vmem %s0, %s297
        %p299 = scmp.lt.s32.totalorder %s27, 3
        %s300 = scalar_select %p299, %s27, 3
        %s301 = smul.addr %s300, 8
        %s302 = smul.addr %s301, 8
        %s303 = scalar_lea.vmem %s1, %s302
        %p304 = scmp.lt.s32.totalorder %s27, 3
        %s305 = scalar_select %p304, %s27, 3
        %s306 = smul.addr %s305, 8
        %s307 = scalar_lea.vmem %s2, %s306
        %p308 = scmp.lt.s32.totalorder %s28, 0
        %s309 = scalar_select %p308, %s28, 0
        %s310 = smul.addr %s309, 2
        %s311 = scalar_lea.vmem %s3, %s310
        %v315 = vld [vmem:[%s298] sm:$0xff]
        %v316 = vmul.f32 %v315, 0.125
        %v317 = vpack.c.bf16 %v316, %v316
        %v318 = vld [vmem:[%s303] sm:$0xff]
        %v319 = vld [vmem:[%s303 + $0x8] sm:$0xff]
        %v320 = vld [vmem:[%s303 + $0x10] sm:$0xff]
        %v321 = vld [vmem:[%s303 + $0x18] sm:$0xff]
        %v322 = vld [vmem:[%s303 + $0x20] sm:$0xff]
        %v323 = vld [vmem:[%s303 + $0x28] sm:$0xff]
        %v324 = vld [vmem:[%s303 + $0x30] sm:$0xff]
        %v325 = vld [vmem:[%s303 + $0x38] sm:$0xff]
        %v326 = vpack.c.bf16 %v319, %v318
        %v327 = vpack.c.bf16 %v321, %v320
        %v328 = vpack.c.bf16 %v323, %v322
        %v329 = vpack.c.bf16 %v325, %v324
        %vm330 = vcmask 523264
        %v332 = vsel %vm330, %v317, 0
        %334 = vmatprep.subr.bf16.mxu0 0
        %335 = vmatpush1.bf16.msra.mxu0 0
        %336 = vmatprep.subr.bf16.mxu0 0
        %337 = vmatpush1.bf16.msra.mxu0 0
        %338 = vmatprep.subr.bf16.mxu0 0
        %339 = vmatpush1.bf16.msra.mxu0 0
        %340 = vmatprep.subr.bf16.mxu0 0
        %341 = vmatpush1.bf16.msra.mxu0 0
        %342 = vmatprep.subr.bf16.mxu0 0
        %343 = vmatpush1.bf16.msra.mxu0 %v329
        %344 = vmatprep.subr.bf16.mxu0 0
        %345 = vmatpush1.bf16.msra.mxu0 %v328
        %346 = vmatprep.subr.bf16.mxu0 0
        %347 = vmatpush1.bf16.msra.mxu0 %v327
        %348 = vmatprep.subr.bf16.mxu0 0
        %349 = vmatpush1.bf16.msra.mxu0 %v326
        %350 = vmatprep.subr.bf16.mxu0 0
        %351 = vmatpush2.bf16.msra.mxu0 0
        %352 = vmatprep.subr.bf16.mxu0 0
        %353 = vmatpush2.bf16.msra.mxu0 0
        %354 = vmatprep.subr.bf16.mxu0 0
        %355 = vmatpush2.bf16.msra.mxu0 0
        %356 = vmatprep.subr.bf16.mxu0 0
        %357 = vmatpush2.bf16.msra.mxu0 0
        %358 = vmatprep.subr.bf16.mxu0 0
        %359 = vmatpush2.bf16.msra.mxu0 0
        %360 = vmatprep.subr.bf16.mxu0 0
        %361 = vmatpush2.bf16.msra.mxu0 0
        %362 = vmatprep.subr.bf16.mxu0 0
        %363 = vmatpush2.bf16.msra.mxu0 0
        %364 = vmatprep.subr.bf16.mxu0 0
        %365 = vmatpush2.bf16.msra.mxu0 0
        %366 = vmatprep.mubr.bf16.mxu0 0
        %367 = vmatmul.mubr.bf16.gmra.mxu0 %v332
        %v368 = vpop.f32.mrf.mxu0
        %v369 = vadd.f32 0.0, %v368
        %v370 = vpop.f32.mrf.mxu0
        %v371 = vpop.f32.mrf.mxu0
        %v372 = vpop.f32.mrf.mxu0
        %373 = vdwg.mxu0
        %v374 = vld [vmem:[%s311] sm:$0x3]
        %vm375 = vnez %v374
        %v376 = vsel %vm375, 16843009, 0
        %v377 = vunpack.c.0.s8 %v376
        %vm378 = vcmp.ne.s32.totalorder %v377, 0
        %v379 = vsel %vm378, -1e+09, %v369
        %vm380 = vcmask 64512
        %v381 = vsel %vm380, %v379, -inf
        %382 = vmax.xlane.f32.xlu0 %v381
        %v383 = vpop.xlane.xlu0 %382
        %v384 = vsub.f32 %v379, %v383
        %v385 = vmul.f32 %v384, 1.442695
        %v386 = vpow.pop %v385
        %v387 = vsel %vm380, %v386, 0.0
        %388 = vadd.xlane.f32.xlu0 %v387
        %v389 = vpop.xlane.xlu0 %388
        %v390 = vrcp.pop %v389
        %v391 = vld [vmem:[%s307] sm:$0xff]
        %v392 = vpack.c.bf16 %v391, %v391
        %v393 = vmul.f32 %v386, %v390
        %v394 = vpack.c.bf16 %v393, %v393
        %v396 = vsel %vm380, %v394, 0
        %vm398 = vcmask 1043456
        %v400 = vsel %vm398, %v392, 0
        %402 = vmatprep.subr.bf16.mxu0 0
        %403 = vmatpush1.bf16.msra.mxu0 0
        %404 = vmatprep.subr.bf16.mxu0 0
        %405 = vmatpush1.bf16.msra.mxu0 0
        %406 = vmatprep.subr.bf16.mxu0 0
        %407 = vmatpush1.bf16.msra.mxu0 0
        %408 = vmatprep.subr.bf16.mxu0 0
        %409 = vmatpush1.bf16.msra.mxu0 0
        %410 = vmatprep.subr.bf16.mxu0 0
        %411 = vmatpush1.bf16.msra.mxu0 0
        %412 = vmatprep.subr.bf16.mxu0 0
        %413 = vmatpush1.bf16.msra.mxu0 0
        %414 = vmatprep.subr.bf16.mxu0 0
        %415 = vmatpush1.bf16.msra.mxu0 0
        %416 = vmatprep.subr.bf16.mxu0 0
        %417 = vmatpush1.bf16.msra.mxu0 %v400
        %418 = vmatprep.subr.bf16.mxu0 0
        %419 = vmatpush2.bf16.msra.mxu0 0
        %420 = vmatprep.subr.bf16.mxu0 0
        %421 = vmatpush2.bf16.msra.mxu0 0
        %422 = vmatprep.subr.bf16.mxu0 0
        %423 = vmatpush2.bf16.msra.mxu0 0
        %424 = vmatprep.subr.bf16.mxu0 0
        %425 = vmatpush2.bf16.msra.mxu0 0
        %426 = vmatprep.subr.bf16.mxu0 0
        %427 = vmatpush2.bf16.msra.mxu0 0
        %428 = vmatprep.subr.bf16.mxu0 0
        %429 = vmatpush2.bf16.msra.mxu0 0
        %430 = vmatprep.subr.bf16.mxu0 0
        %431 = vmatpush2.bf16.msra.mxu0 0
        %432 = vmatprep.subr.bf16.mxu0 0
        %433 = vmatpush2.bf16.msra.mxu0 0
        %434 = vmatprep.mubr.bf16.mxu0 0
        %435 = vmatmul.mubr.bf16.gmra.mxu0 %v396
        %v436 = vpop.f32.mrf.mxu0
        %v437 = vadd.f32 0.0, %v436
        %v438 = vpop.f32.mrf.mxu0
        %v439 = vpop.f32.mrf.mxu0
        %v440 = vpop.f32.mrf.mxu0
        %441 = vdwg.mxu0
        %442 = vst.msk [vmem:[%s284] sm:$0xff] %vm330, %v437
        %443 = vst.msk [vmem:[%s291] sm:$0xff] %vm380, %v393
        %s444 = sand.u32 %s151, 1
        %s445 = scalar_lea.sflag [#allocation3], %s444
        %s446 = sand.u32 %s151, 1
        %s447 = smul.addr %s446, 8
        %s448 = scalar_lea.vmem [#allocation2], %s447
        %s449 = sand.u32 %s179, 1
        %s450 = scalar_lea.sflag [#allocation5], %s449
        %s451 = sand.u32 %s179, 1
        %s452 = smul.addr %s451, 8
        %s453 = scalar_lea.vmem [#allocation4], %s452
        // Predicated region
        $region37: #{tpu_custom_call.1} parent=35 // pred_check
          %p454 = pneg %p161
        $region38: #{tpu_custom_call.1} parent=35 // pred_check_branch
          %456 = sbr.rel (%p454) target = $region40
        $region39: #{tpu_custom_call.1} parent=35 // pred_region
          %s458 = ssub.s32 128, 128
          %459 = vsyncadd %s445, %s458
          %s460 = sadd.s32 %s28, %s27
          %s461 = smul.addr %s460, 128
          %s462 = scalar_lea.hbm %s4, %s461
          %s464 = sshll.u32 %s448, 4
          %s465 = int_to_ptr.vmem [resolvable:$true] %s464
          %467 = dma.vmem_to_hbm [thread:$0]  %s465, 128, %s462, %s445
        $region40: #{tpu_custom_call.1} parent=35 // pred_fallthru
          _
        // Predicated region
        $region41: #{tpu_custom_call.1} parent=35 // pred_check
          %p468 = pneg %p189
        $region42: #{tpu_custom_call.1} parent=35 // pred_check_branch
          %470 = sbr.rel (%p468) target = $region44
        $region43: #{tpu_custom_call.1} parent=35 // pred_region
          %s472 = ssub.s32 128, 128
          %473 = vsyncadd %s450, %s472
          %s474 = sadd.s32 %s28, %s27
          %s475 = smul.addr %s474, 128
          %s476 = scalar_lea.hbm %s5, %s475
          %s478 = sshll.u32 %s453, 4
          %s479 = int_to_ptr.vmem [resolvable:$true] %s478
          %481 = dma.vmem_to_hbm [thread:$0]  %s479, 128, %s476, %s450
        $region44: #{tpu_custom_call.1} parent=35 // pred_fallthru
          _
      $region36: #{tpu_custom_call.1} parent=5 // pred_fallthru
        _
      %p482 = scmp.le.s32.totalorder 2, %s18
      // Predicated region
      $region45: #{tpu_custom_call.1} parent=5 // pred_check
        %p483 = pneg %p482
      $region46: #{tpu_custom_call.1} parent=5 // pred_check_branch
        %485 = sbr.rel (%p483) target = $region48
      $region47: #{tpu_custom_call.1} parent=5 // pred_region
        %s486 = ssub.s32 %s18, 2
        // Predicated region
        $region49: #{tpu_custom_call.1} parent=47 // pred_check
          %p487 = pneg %p167
        $region50: #{tpu_custom_call.1} parent=47 // pred_check_branch
          %489 = sbr.rel (%p487) target = $region52
        $region51: #{tpu_custom_call.1} parent=47 // pred_region
          %s490 = sand.u32 %s152, 1
          %s491 = scalar_lea.sflag [#allocation3], %s490
          %s492 = sand.u32 %s152, 1
          %s493 = smul.addr %s492, 8
          %s494 = scalar_lea.vmem [#allocation2], %s493
          %495 = dma.done %s491, 128
        $region52: #{tpu_custom_call.1} parent=47 // pred_fallthru
          _
        // Predicated region
        $region53: #{tpu_custom_call.1} parent=47 // pred_check
          %p496 = pneg %p195
        $region54: #{tpu_custom_call.1} parent=47 // pred_check_branch
          %498 = sbr.rel (%p496) target = $region56
        $region55: #{tpu_custom_call.1} parent=47 // pred_region
          %s499 = sand.u32 %s180, 1
          %s500 = scalar_lea.sflag [#allocation5], %s499
          %s501 = sand.u32 %s180, 1
          %s502 = smul.addr %s501, 8
          %s503 = scalar_lea.vmem [#allocation4], %s502
          %504 = dma.done %s500, 128
        $region56: #{tpu_custom_call.1} parent=47 // pred_fallthru
          _
      $region48: #{tpu_custom_call.1} parent=5 // pred_fallthru
        _
    $region6: #{tpu_custom_call.1} parent=1 // loop_footer
      %s22 = sadd.s32 1, %s18
    $region7: #{tpu_custom_call.1} parent=1 // loop_footer_branch
      %17 = sbr.rel target = $region3
    $region8: #{tpu_custom_call.1} parent=1 // loop_exit
      _
    %505 = vsyncpa [#allocation3], 1
    %s506 = scalar_lea.sflag [#allocation3], 1
    %507 = vsyncpa %s506, 1
    %508 = vsyncpa [#allocation5], 1
    %s509 = scalar_lea.sflag [#allocation5], 1
    %510 = vsyncpa %s509, 1

</llo_original>
